<compile_context>
chip_gen: v6e
topology: v6e:2x2x1
jax: 0.10.0
libtpu: 0.0.40
codegen_flags: <defaults>
</compile_context>

<pallas_src>
import functools

import numpy as np
import jax
import jax.numpy as jnp
from jax.experimental import pallas as pl
from jax.experimental.pallas import tpu as pltpu


def _encoder_kernel(
    x_ref,      # (bt, N, D)        f32  input rows for this batch tile (full N)
    a_ref,      # (H, tq, N)        mxu  l1-normalized softplus(weight_mat), q-tile
    m_ref,      # (D, H*D)|(H,D,D)  mxu  folded projections M_h = Wv_h^T Wo_h^T
    c_ref,      # (1, D)            f32  folded bias c = bv @ Wo^T + bo
    g1_ref, be1_ref,   # (1, D)     f32  norm1
    w1t_ref,    # (D, F)            mxu  conv1 weight^T
    b1_ref,     # (1, F)            f32
    w2t_ref,    # (F, D)            mxu  conv2 weight^T
    b2_ref,     # (1, D)            f32
    g2_ref, be2_ref,   # (1, D)     f32  norm2
    o_ref,      # (bt, tq, D)       f32  output query tile
    xm_ref,     # scratch: (bt, N, H*D) [wide] or (bt*H, N, D) [narrow]
    *,
    n_heads: int,
    bt: int,
    tokens: int,
    tq: int,
    d_model: int,
    wide_proj: bool,
    mxu_dtype,
    eps_ln: float = 1e-5,
):
    q = pl.program_id(1)

    # Cache the folded value/out projection across query tiles: it only depends
    # on the batch tile, so recompute it at q == 0 only.
    @pl.when(q == 0)
    def _():
        for b in range(bt):
            xb = x_ref[b].astype(mxu_dtype)                           # (N, D)
            if wide_proj:
                xm_ref[b] = jnp.dot(
                    xb, m_ref[...], preferred_element_type=jnp.float32
                ).astype(xm_ref.dtype)                                # (N, H*D)
            else:
                for h in range(n_heads):
                    xm_ref[b * n_heads + h] = jnp.dot(
                        xb, m_ref[h], preferred_element_type=jnp.float32
                    ).astype(xm_ref.dtype)                            # (N, D)

    c = c_ref[...]
    g1 = g1_ref[...]
    be1 = be1_ref[...]
    g2 = g2_ref[...]
    be2 = be2_ref[...]
    b1 = b1_ref[...]
    b2 = b2_ref[...]
    w1t = w1t_ref[...]
    w2t = w2t_ref[...]

    for b in range(bt):
        # ---- folded multi-head token mixing: sum_h A_h[q-tile] @ xm_h ----
        if wide_proj:
            xm_b = xm_ref[b]                                          # (N, H*D)
        mixed = None
        for h in range(n_heads):
            if wide_proj:
                xm_bh = xm_b[:, h * d_model:(h + 1) * d_model]        # lane-aligned
            else:
                xm_bh = xm_ref[b * n_heads + h]                       # (N, D)
            part = jnp.dot(a_ref[h], xm_bh,
                           preferred_element_type=jnp.float32)        # (tq, D)
            mixed = part if mixed is None else mixed + part

        # ---- residual + LayerNorm 1 (f32) ----
        if tq == tokens:
            xq = x_ref[b]                                             # (tq, D)
        else:
            row0 = pl.multiple_of(q * tq, 8)
            xq = x_ref[b, pl.ds(row0, tq), :]
        x1 = xq + mixed + c
        mu = jnp.mean(x1, axis=-1, keepdims=True)
        var = jnp.mean(jnp.square(x1 - mu), axis=-1, keepdims=True)
        x1 = (x1 - mu) * jax.lax.rsqrt(var + eps_ln) * g1 + be1

        # ---- FFN (Conv1d kernel_size=1 == pointwise linear), relu ----
        # TODO(synk): chunk over rows here if (tq, F) f32 intermediate is too
        # large for v7x's 64 MiB VMEM at big query tiles.
        y = jnp.dot(x1.astype(mxu_dtype), w1t, preferred_element_type=jnp.float32)
        y = jnp.maximum(y + b1, 0.0)                                  # (tq, F)
        y = jnp.dot(y.astype(mxu_dtype), w2t, preferred_element_type=jnp.float32)
        y = y + b2                                                    # (tq, D)

        # ---- residual + LayerNorm 2 (f32) ----
        z = x1 + y
        mu2 = jnp.mean(z, axis=-1, keepdims=True)
        var2 = jnp.mean(jnp.square(z - mu2), axis=-1, keepdims=True)
        o_ref[b] = ((z - mu2) * jax.lax.rsqrt(var2 + eps_ln) * g2 + be2
                    ).astype(o_ref.dtype)


def _pick_batch_tile(B):
    # Aim for >= 2 (ideally 4+) grid steps along the "parallel" axis so both
    # v7x TensorCores are used and x/out DMAs pipeline against compute.
    target = max(1, B // 4)
    return max(d for d in range(1, target + 1) if B % d == 0)


def _pick_query_tile(N):
    if N <= 512:
        return N
    for t in (512, 384, 256, 128, 64, 32, 16, 8):
        if N % t == 0:
            return t
    return N


def linear_encoder_multihead(x, params, *, n_heads, batch_tile=None,
                             query_tile=None, mxu_dtype=jnp.bfloat16):
    """Forward pass of LinearEncoder_Multihead (eval mode; dropout == identity).

    x: (B, N, D) float32; params: dict of float32 arrays. Returns (B, N, D) f32.
    """
    B, N, D = x.shape
    HD2 = params["wv"].shape[0]
    dv = HD2 // n_heads
    F_ = params["w1"].shape[0]

    bt = _pick_batch_tile(B) if batch_tile is None else batch_tile
    assert B % bt == 0, "batch_tile must divide batch"
    tq = _pick_query_tile(N) if query_tile is None else query_tile
    assert N % tq == 0, "query_tile must divide token_num"
    assert tq == N or tq % 8 == 0, "query_tile must be N or a multiple of 8"

    # ---- one-time, batch-invariant precompute (plain XLA, outside the grid) ----
    A = jax.nn.softplus(params["wm"])
    A = A / jnp.maximum(jnp.sum(A, axis=-1, keepdims=True), 1e-12)     # (H, N, N)
    A = A.astype(mxu_dtype)

    # Fold v_proj / out_proj per head: M_h = Wv_h^T Wo_h^T (D, D).
    wv3 = params["wv"].reshape(n_heads, dv, D)
    wo3 = params["wo"].reshape(D, n_heads, dv)
    M = jnp.einsum("hvd,ehv->hde", wv3, wo3)                           # (H, D, D)
    wide_proj = (D % 128 == 0)
    if wide_proj:
        # One MXU-wide matmul; per-head column slices stay lane-aligned.
        M = jnp.transpose(M, (1, 0, 2)).reshape(D, n_heads * D)        # (D, H*D)
    M = M.astype(mxu_dtype)
    # Folded bias (exact because l1-normalized A rows sum to 1).
    c = (params["bv"] @ params["wo"].T + params["bo"]).astype(jnp.float32)  # (1, D)

    w1t = params["w1"].T.astype(mxu_dtype)                             # (D, F)
    w2t = params["w2"].T.astype(mxu_dtype)                             # (F, D)

    grid = (B // bt, N // tq)

    def const_spec(arr):
        nd = arr.ndim
        idx = lambda i, q, _nd=nd: (0,) * _nd
        try:
            # Constant-index blocks: single buffer (halves their VMEM footprint).
            return pl.BlockSpec(arr.shape, idx, pipeline_mode=pl.Buffered(1))
        except Exception:
            return pl.BlockSpec(arr.shape, idx)

    in_specs = [
        pl.BlockSpec((bt, N, D), lambda i, q: (i, 0, 0)),              # x (full N resident)
        pl.BlockSpec((n_heads, tq, N), lambda i, q: (0, q, 0)),        # A query tile
        const_spec(M), const_spec(c),
        const_spec(params["g1"]), const_spec(params["be1"]),
        const_spec(w1t), const_spec(params["b1"]),
        const_spec(w2t), const_spec(params["b2"]),
        const_spec(params["g2"]), const_spec(params["be2"]),
    ]
    out_specs = pl.BlockSpec((bt, tq, D), lambda i, q: (i, q, 0))

    if wide_proj:
        xm_scratch = pltpu.VMEM((bt, N, n_heads * D), mxu_dtype)
    else:
        xm_scratch = pltpu.VMEM((bt * n_heads, N, D), mxu_dtype)

    # Explicit VMEM budget from actual residency (+ headroom for FFN temps).
    msz = np.dtype(mxu_dtype).itemsize
    est = (2 * bt * N * D * 4                       # x tiles (double-buffered)
           + 2 * bt * tq * D * 4                    # out tiles (double-buffered)
           + 2 * n_heads * tq * N * msz             # A tile (double-buffered)
           + (M.size + w1t.size + w2t.size) * msz   # single-buffered constants
           + bt * n_heads * N * D * msz             # xm scratch
           + 3 * bt * tq * max(F_, D) * 4)          # in-kernel temporaries
    try:
        cap = int(pltpu.get_tpu_info().vmem_capacity_bytes * 3 // 4)   # ~48 MiB on v7x
    except Exception:
        cap = 100 * 1024 * 1024                                        # v5e/v6e safe cap
    vmem_limit = int(min(max(2 * est, 32 * 1024 * 1024),
                         max(cap, 32 * 1024 * 1024)))

    kernel = functools.partial(
        _encoder_kernel, n_heads=n_heads, bt=bt, tokens=N, tq=tq, d_model=D,
        wide_proj=wide_proj, mxu_dtype=mxu_dtype)

    out = pl.pallas_call(
        kernel,
        out_shape=jax.ShapeDtypeStruct((B, N, D), jnp.float32),
        grid=grid,
        in_specs=in_specs,
        out_specs=out_specs,
        scratch_shapes=[xm_scratch],
        compiler_params=pltpu.CompilerParams(
            dimension_semantics=("parallel", "arbitrary"),
            vmem_limit_bytes=vmem_limit),
    )(x, A, M, c,
      params["g1"], params["be1"],
      w1t, params["b1"],
      w2t, params["b2"],
      params["g2"], params["be2"])
    return out


def reference(x, p, *, n_heads):
    """Pure-JAX reference mirroring the PyTorch forward (eval mode)."""
    B, N, D = x.shape
    HD2 = p["wv"].shape[0]
    dv = HD2 // n_heads
    v = x @ p["wv"].T + p["bv"]                              # (B, N, HD2)
    v = v.reshape(B, N, n_heads, dv).transpose(0, 2, 1, 3)   # (B, H, N, dv)
    A = jax.nn.softplus(p["wm"])
    A = A / jnp.maximum(jnp.sum(A, axis=-1, keepdims=True), 1e-12)
    new_x = jnp.einsum("hnm,bhmd->bhnd", A, v)               # (B, H, N, dv)
    new_x = new_x.transpose(0, 2, 1, 3).reshape(B, N, HD2)
    x1 = x + new_x @ p["wo"].T + p["bo"]
    mu = x1.mean(-1, keepdims=True)
    var = ((x1 - mu) ** 2).mean(-1, keepdims=True)
    x1 = (x1 - mu) / jnp.sqrt(var + 1e-5) * p["g1"] + p["be1"]
    y = jnp.maximum(x1 @ p["w1"].T + p["b1"], 0.0)
    y = y @ p["w2"].T + p["b2"]
    z = x1 + y
    mu2 = z.mean(-1, keepdims=True)
    var2 = ((z - mu2) ** 2).mean(-1, keepdims=True)
    return (z - mu2) / jnp.sqrt(var2 + 1e-5) * p["g2"] + p["be2"]


if __name__ == "__main__":
    # Small shapes consistent with the module.
    B, N, D = 2, 8, 32          # batch, token_num, d_model
    n_heads = 2
    head_dim = D // n_heads
    HD2 = head_dim * head_dim   # 256
    d_ff = 4 * D                # 128

    key = jax.random.PRNGKey(0)
    ks = jax.random.split(key, 16)
    s = 0.1
    params = {
        "wv": jax.random.normal(ks[0], (HD2, D), jnp.float32) * s,
        "bv": jax.random.normal(ks[1], (1, HD2), jnp.float32) * s,
        "wm": jax.random.normal(ks[2], (n_heads, N, N), jnp.float32),
        "wo": jax.random.normal(ks[3], (D, HD2), jnp.float32) * s,
        "bo": jax.random.normal(ks[4], (1, D), jnp.float32) * s,
        "g1": 1.0 + jax.random.normal(ks[5], (1, D), jnp.float32) * s,
        "be1": jax.random.normal(ks[6], (1, D), jnp.float32) * s,
        "w1": jax.random.normal(ks[7], (d_ff, D), jnp.float32) * s,   # conv1 (k=1)
        "b1": jax.random.normal(ks[8], (1, d_ff), jnp.float32) * s,
        "w2": jax.random.normal(ks[9], (D, d_ff), jnp.float32) * s,   # conv2 (k=1)
        "b2": jax.random.normal(ks[10], (1, D), jnp.float32) * s,
        "g2": 1.0 + jax.random.normal(ks[11], (1, D), jnp.float32) * s,
        "be2": jax.random.normal(ks[12], (1, D), jnp.float32) * s,
    }
    x = jax.random.normal(ks[13], (B, N, D), jnp.float32)

    out = linear_encoder_multihead(x, params, n_heads=n_heads)
    out = jax.block_until_ready(out)

    ref = reference(x, params, n_heads=n_heads)
    err = float(jnp.max(jnp.abs(out - ref)))
    assert out.shape == (B, N, D)
    # bf16 MXU operands (f32 accumulate): tolerance relaxed vs. pure-f32 path.
    assert err < 5e-2, f"mismatch vs reference: {err}"
    print("KERNEL_OK")
</pallas_src>

<mosaic_0001>
module attributes {stable_mosaic.version = 11 : i64} {
  func.func @_encoder_kernel(%arg0: i32, %arg1: i32, %arg2: memref<1x8x32xf32, #tpu.memory_space<vmem>>, %arg3: memref<2x8x8xbf16, #tpu.memory_space<vmem>>, %arg4: memref<2x32x32xbf16, #tpu.memory_space<vmem>>, %arg5: memref<1x32xf32, #tpu.memory_space<vmem>>, %arg6: memref<1x32xf32, #tpu.memory_space<vmem>>, %arg7: memref<1x32xf32, #tpu.memory_space<vmem>>, %arg8: memref<32x128xbf16, #tpu.memory_space<vmem>>, %arg9: memref<1x128xf32, #tpu.memory_space<vmem>>, %arg10: memref<128x32xbf16, #tpu.memory_space<vmem>>, %arg11: memref<1x32xf32, #tpu.memory_space<vmem>>, %arg12: memref<1x32xf32, #tpu.memory_space<vmem>>, %arg13: memref<1x32xf32, #tpu.memory_space<vmem>>, %arg14: memref<1x8x32xf32, #tpu.memory_space<vmem>>, %arg15: memref<2x8x32xbf16, #tpu.memory_space<vmem>>) attributes {dimension_semantics = [#tpu.dimension_semantics<parallel>, #tpu.dimension_semantics<arbitrary>], iteration_bounds = array<i64: 2, 1>, scalar_prefetch = 0 : i64, scratch_operands = 1 : i64, tpu.core_type = #tpu.core_type<tc>, window_params = [{transform_indices = @transform_0, window_bounds = array<i64: 1, 8, 32>}, {transform_indices = @transform_1, window_bounds = array<i64: 2, 8, 8>}, {pipeline_mode = #tpu.pipeline_mode<synchronous>, transform_indices = @transform_2, window_bounds = array<i64: 2, 32, 32>}, {pipeline_mode = #tpu.pipeline_mode<synchronous>, transform_indices = @transform_3, window_bounds = array<i64: 1, 32>}, {pipeline_mode = #tpu.pipeline_mode<synchronous>, transform_indices = @transform_4, window_bounds = array<i64: 1, 32>}, {pipeline_mode = #tpu.pipeline_mode<synchronous>, transform_indices = @transform_5, window_bounds = array<i64: 1, 32>}, {pipeline_mode = #tpu.pipeline_mode<synchronous>, transform_indices = @transform_6, window_bounds = array<i64: 32, 128>}, {pipeline_mode = #tpu.pipeline_mode<synchronous>, transform_indices = @transform_7, window_bounds = array<i64: 1, 128>}, {pipeline_mode = #tpu.pipeline_mode<synchronous>, transform_indices = @transform_8, window_bounds = array<i64: 128, 32>}, {pipeline_mode = #tpu.pipeline_mode<synchronous>, transform_indices = @transform_9, window_bounds = array<i64: 1, 32>}, {pipeline_mode = #tpu.pipeline_mode<synchronous>, transform_indices = @transform_10, window_bounds = array<i64: 1, 32>}, {pipeline_mode = #tpu.pipeline_mode<synchronous>, transform_indices = @transform_11, window_bounds = array<i64: 1, 32>}, {transform_indices = @transform_12, window_bounds = array<i64: 1, 8, 32>}]} {
    %c0_i32 = arith.constant 0 : i32
    %0 = arith.cmpi eq, %arg1, %c0_i32 : i32
    %1 = arith.extui %0 : i1 to i32
    %c0_i32_0 = arith.constant 0 : i32
    %2 = arith.cmpi ne, %1, %c0_i32_0 : i32
    scf.if %2 {
      %c0_49 = arith.constant 0 : index
      %c0_50 = arith.constant 0 : index
      %c0_51 = arith.constant 0 : index
      %86 = vector.load %arg2[%c0_49, %c0_50, %c0_51] : memref<1x8x32xf32, #tpu.memory_space<vmem>>, vector<1x8x32xf32>
      %87 = vector.shape_cast %86 : vector<1x8x32xf32> to vector<8x32xf32>
      %88 = arith.truncf %87 : vector<8x32xf32> to vector<8x32xbf16>
      %c0_52 = arith.constant 0 : index
      %c0_53 = arith.constant 0 : index
      %c0_54 = arith.constant 0 : index
      %89 = vector.load %arg4[%c0_52, %c0_53, %c0_54] : memref<2x32x32xbf16, #tpu.memory_space<vmem>>, vector<1x32x32xbf16>
      %90 = vector.shape_cast %89 : vector<1x32x32xbf16> to vector<32x32xbf16>
      %cst_55 = arith.constant dense<0.000000e+00> : vector<8x32xf32>
      %91 = tpu.matmul %88, %90, %cst_55 {dimension_numbers = #tpu.dot_dimension_numbers<[1], [0], [0], [1], [0, 0, 1, 1], [], []>} : vector<8x32xbf16>, vector<32x32xbf16>, vector<8x32xf32> -> vector<8x32xf32>
      %92 = arith.truncf %91 : vector<8x32xf32> to vector<8x32xbf16>
      %c0_56 = arith.constant 0 : index
      %c0_57 = arith.constant 0 : index
      %c0_58 = arith.constant 0 : index
      %93 = vector.load %arg15[%c0_56, %c0_57, %c0_58] : memref<2x8x32xbf16, #tpu.memory_space<vmem>>, vector<1x8x32xbf16>
      %94 = vector.shape_cast %93 : vector<1x8x32xbf16> to vector<8x32xbf16>
      %95 = vector.shape_cast %92 : vector<8x32xbf16> to vector<1x8x32xbf16>
      tpu.vector_store %arg15[%c0_56, %c0_57, %c0_58], %95 {strides = array<i32>} : memref<2x8x32xbf16, #tpu.memory_space<vmem>>, vector<1x8x32xbf16>,
      %c1_59 = arith.constant 1 : index
      %c0_60 = arith.constant 0 : index
      %c0_61 = arith.constant 0 : index
      %96 = vector.load %arg4[%c1_59, %c0_60, %c0_61] : memref<2x32x32xbf16, #tpu.memory_space<vmem>>, vector<1x32x32xbf16>
      %97 = vector.shape_cast %96 : vector<1x32x32xbf16> to vector<32x32xbf16>
      %cst_62 = arith.constant dense<0.000000e+00> : vector<8x32xf32>
      %98 = tpu.matmul %88, %97, %cst_62 {dimension_numbers = #tpu.dot_dimension_numbers<[1], [0], [0], [1], [0, 0, 1, 1], [], []>} : vector<8x32xbf16>, vector<32x32xbf16>, vector<8x32xf32> -> vector<8x32xf32>
      %99 = arith.truncf %98 : vector<8x32xf32> to vector<8x32xbf16>
      %c1_63 = arith.constant 1 : index
      %c0_64 = arith.constant 0 : index
      %c0_65 = arith.constant 0 : index
      %100 = vector.load %arg15[%c1_63, %c0_64, %c0_65] : memref<2x8x32xbf16, #tpu.memory_space<vmem>>, vector<1x8x32xbf16>
      %101 = vector.shape_cast %100 : vector<1x8x32xbf16> to vector<8x32xbf16>
      %102 = vector.shape_cast %99 : vector<8x32xbf16> to vector<1x8x32xbf16>
      tpu.vector_store %arg15[%c1_63, %c0_64, %c0_65], %102 {strides = array<i32>} : memref<2x8x32xbf16, #tpu.memory_space<vmem>>, vector<1x8x32xbf16>,
    } else {
    }
    %c0 = arith.constant 0 : index
    %c0_1 = arith.constant 0 : index
    %3 = vector.load %arg5[%c0, %c0_1] : memref<1x32xf32, #tpu.memory_space<vmem>>, vector<1x32xf32>
    %c0_2 = arith.constant 0 : index
    %c0_3 = arith.constant 0 : index
    %4 = vector.load %arg6[%c0_2, %c0_3] : memref<1x32xf32, #tpu.memory_space<vmem>>, vector<1x32xf32>
    %c0_4 = arith.constant 0 : index
    %c0_5 = arith.constant 0 : index
    %5 = vector.load %arg7[%c0_4, %c0_5] : memref<1x32xf32, #tpu.memory_space<vmem>>, vector<1x32xf32>
    %c0_6 = arith.constant 0 : index
    %c0_7 = arith.constant 0 : index
    %6 = vector.load %arg12[%c0_6, %c0_7] : memref<1x32xf32, #tpu.memory_space<vmem>>, vector<1x32xf32>
    %c0_8 = arith.constant 0 : index
    %c0_9 = arith.constant 0 : index
    %7 = vector.load %arg13[%c0_8, %c0_9] : memref<1x32xf32, #tpu.memory_space<vmem>>, vector<1x32xf32>
    %c0_10 = arith.constant 0 : index
    %c0_11 = arith.constant 0 : index
    %8 = vector.load %arg9[%c0_10, %c0_11] : memref<1x128xf32, #tpu.memory_space<vmem>>, vector<1x128xf32>
    %c0_12 = arith.constant 0 : index
    %c0_13 = arith.constant 0 : index
    %9 = vector.load %arg11[%c0_12, %c0_13] : memref<1x32xf32, #tpu.memory_space<vmem>>, vector<1x32xf32>
    %c0_14 = arith.constant 0 : index
    %c0_15 = arith.constant 0 : index
    %10 = vector.load %arg8[%c0_14, %c0_15] : memref<32x128xbf16, #tpu.memory_space<vmem>>, vector<32x128xbf16>
    %c0_16 = arith.constant 0 : index
    %c0_17 = arith.constant 0 : index
    %11 = vector.load %arg10[%c0_16, %c0_17] : memref<128x32xbf16, #tpu.memory_space<vmem>>, vector<128x32xbf16>
    %c0_18 = arith.constant 0 : index
    %c0_19 = arith.constant 0 : index
    %c0_20 = arith.constant 0 : index
    %12 = vector.load %arg15[%c0_18, %c0_19, %c0_20] : memref<2x8x32xbf16, #tpu.memory_space<vmem>>, vector<1x8x32xbf16>
    %13 = vector.shape_cast %12 : vector<1x8x32xbf16> to vector<8x32xbf16>
    %c0_21 = arith.constant 0 : index
    %c0_22 = arith.constant 0 : index
    %c0_23 = arith.constant 0 : index
    %14 = vector.load %arg3[%c0_21, %c0_22, %c0_23] : memref<2x8x8xbf16, #tpu.memory_space<vmem>>, vector<1x8x8xbf16>
    %15 = vector.shape_cast %14 : vector<1x8x8xbf16> to vector<8x8xbf16>
    %cst = arith.constant dense<0.000000e+00> : vector<8x32xf32>
    %16 = tpu.matmul %15, %13, %cst {dimension_numbers = #tpu.dot_dimension_numbers<[1], [0], [0], [1], [0, 0, 1, 1], [], []>} : vector<8x8xbf16>, vector<8x32xbf16>, vector<8x32xf32> -> vector<8x32xf32>
    %c1 = arith.constant 1 : index
    %c0_24 = arith.constant 0 : index
    %c0_25 = arith.constant 0 : index
    %17 = vector.load %arg15[%c1, %c0_24, %c0_25] : memref<2x8x32xbf16, #tpu.memory_space<vmem>>, vector<1x8x32xbf16>
    %18 = vector.shape_cast %17 : vector<1x8x32xbf16> to vector<8x32xbf16>
    %c1_26 = arith.constant 1 : index
    %c0_27 = arith.constant 0 : index
    %c0_28 = arith.constant 0 : index
    %19 = vector.load %arg3[%c1_26, %c0_27, %c0_28] : memref<2x8x8xbf16, #tpu.memory_space<vmem>>, vector<1x8x8xbf16>
    %20 = vector.shape_cast %19 : vector<1x8x8xbf16> to vector<8x8xbf16>
    %cst_29 = arith.constant dense<0.000000e+00> : vector<8x32xf32>
    %21 = tpu.matmul %20, %18, %cst_29 {dimension_numbers = #tpu.dot_dimension_numbers<[1], [0], [0], [1], [0, 0, 1, 1], [], []>} : vector<8x8xbf16>, vector<8x32xbf16>, vector<8x32xf32> -> vector<8x32xf32>
    %22 = arith.addf %16, %21 : vector<8x32xf32>
    %c0_30 = arith.constant 0 : index
    %c0_31 = arith.constant 0 : index
    %c0_32 = arith.constant 0 : index
    %23 = vector.load %arg2[%c0_30, %c0_31, %c0_32] : memref<1x8x32xf32, #tpu.memory_space<vmem>>, vector<1x8x32xf32>
    %24 = vector.shape_cast %23 : vector<1x8x32xf32> to vector<8x32xf32>
    %25 = arith.addf %24, %22 : vector<8x32xf32>
    %26 = vector.broadcast %3 : vector<1x32xf32> to vector<8x32xf32>
    %27 = arith.addf %25, %26 : vector<8x32xf32>
    %cst_33 = arith.constant dense<0.000000e+00> : vector<8xf32>
    %28 = vector.multi_reduction <add>, %27, %cst_33 [1] : vector<8x32xf32> to vector<8xf32>
    %29 = vector.shape_cast %28 : vector<8xf32> to vector<8x1xf32>
    %cst_34 = arith.constant 3.200000e+01 : f32
    %30 = vector.broadcast %cst_34 : f32 to vector<8x1xf32>
    %31 = arith.divf %29, %30 : vector<8x1xf32>
    %32 = vector.broadcast %31 : vector<8x1xf32> to vector<8x32xf32>
    %33 = arith.subf %27, %32 : vector<8x32xf32>
    %34 = arith.mulf %33, %33 : vector<8x32xf32>
    %cst_35 = arith.constant dense<0.000000e+00> : vector<8xf32>
    %35 = vector.multi_reduction <add>, %34, %cst_35 [1] : vector<8x32xf32> to vector<8xf32>
    %36 = vector.shape_cast %35 : vector<8xf32> to vector<8x1xf32>
    %cst_36 = arith.constant 3.200000e+01 : f32
    %37 = vector.broadcast %cst_36 : f32 to vector<8x1xf32>
    %38 = arith.divf %36, %37 : vector<8x1xf32>
    %39 = vector.broadcast %31 : vector<8x1xf32> to vector<8x32xf32>
    %40 = arith.subf %27, %39 : vector<8x32xf32>
    %cst_37 = arith.constant 9.99999974E-6 : f32
    %41 = vector.broadcast %cst_37 : f32 to vector<8x1xf32>
    %42 = arith.addf %38, %41 : vector<8x1xf32>
    %43 = math.rsqrt %42 : vector<8x1xf32>
    %44 = vector.broadcast %43 : vector<8x1xf32> to vector<8x32xf32>
    %45 = arith.mulf %40, %44 : vector<8x32xf32>
    %46 = vector.broadcast %4 : vector<1x32xf32> to vector<8x32xf32>
    %47 = arith.mulf %45, %46 : vector<8x32xf32>
    %48 = vector.broadcast %5 : vector<1x32xf32> to vector<8x32xf32>
    %49 = arith.addf %47, %48 : vector<8x32xf32>
    %50 = arith.truncf %49 : vector<8x32xf32> to vector<8x32xbf16>
    %cst_38 = arith.constant dense<0.000000e+00> : vector<8x128xf32>
    %51 = tpu.matmul %50, %10, %cst_38 {dimension_numbers = #tpu.dot_dimension_numbers<[1], [0], [0], [1], [0, 0, 1, 1], [], []>} : vector<8x32xbf16>, vector<32x128xbf16>, vector<8x128xf32> -> vector<8x128xf32>
    %52 = vector.broadcast %8 : vector<1x128xf32> to vector<8x128xf32>
    %53 = arith.addf %51, %52 : vector<8x128xf32>
    %cst_39 = arith.constant 0.000000e+00 : f32
    %54 = vector.broadcast %cst_39 : f32 to vector<8x128xf32>
    %55 = arith.maximumf %53, %54 : vector<8x128xf32>
    %56 = arith.truncf %55 : vector<8x128xf32> to vector<8x128xbf16>
    %cst_40 = arith.constant dense<0.000000e+00> : vector<8x32xf32>
    %57 = tpu.matmul %56, %11, %cst_40 {dimension_numbers = #tpu.dot_dimension_numbers<[1], [0], [0], [1], [0, 0, 1, 1], [], []>} : vector<8x128xbf16>, vector<128x32xbf16>, vector<8x32xf32> -> vector<8x32xf32>
    %58 = vector.broadcast %9 : vector<1x32xf32> to vector<8x32xf32>
    %59 = arith.addf %57, %58 : vector<8x32xf32>
    %60 = arith.addf %49, %59 : vector<8x32xf32>
    %cst_41 = arith.constant dense<0.000000e+00> : vector<8xf32>
    %61 = vector.multi_reduction <add>, %60, %cst_41 [1] : vector<8x32xf32> to vector<8xf32>
    %62 = vector.shape_cast %61 : vector<8xf32> to vector<8x1xf32>
    %cst_42 = arith.constant 3.200000e+01 : f32
    %63 = vector.broadcast %cst_42 : f32 to vector<8x1xf32>
    %64 = arith.divf %62, %63 : vector<8x1xf32>
    %65 = vector.broadcast %64 : vector<8x1xf32> to vector<8x32xf32>
    %66 = arith.subf %60, %65 : vector<8x32xf32>
    %67 = arith.mulf %66, %66 : vector<8x32xf32>
    %cst_43 = arith.constant dense<0.000000e+00> : vector<8xf32>
    %68 = vector.multi_reduction <add>, %67, %cst_43 [1] : vector<8x32xf32> to vector<8xf32>
    %69 = vector.shape_cast %68 : vector<8xf32> to vector<8x1xf32>
    %cst_44 = arith.constant 3.200000e+01 : f32
    %70 = vector.broadcast %cst_44 : f32 to vector<8x1xf32>
    %71 = arith.divf %69, %70 : vector<8x1xf32>
    %72 = vector.broadcast %64 : vector<8x1xf32> to vector<8x32xf32>
    %73 = arith.subf %60, %72 : vector<8x32xf32>
    %cst_45 = arith.constant 9.99999974E-6 : f32
    %74 = vector.broadcast %cst_45 : f32 to vector<8x1xf32>
    %75 = arith.addf %71, %74 : vector<8x1xf32>
    %76 = math.rsqrt %75 : vector<8x1xf32>
    %77 = vector.broadcast %76 : vector<8x1xf32> to vector<8x32xf32>
    %78 = arith.mulf %73, %77 : vector<8x32xf32>
    %79 = vector.broadcast %6 : vector<1x32xf32> to vector<8x32xf32>
    %80 = arith.mulf %78, %79 : vector<8x32xf32>
    %81 = vector.broadcast %7 : vector<1x32xf32> to vector<8x32xf32>
    %82 = arith.addf %80, %81 : vector<8x32xf32>
    %c0_46 = arith.constant 0 : index
    %c0_47 = arith.constant 0 : index
    %c0_48 = arith.constant 0 : index
    %83 = vector.load %arg14[%c0_46, %c0_47, %c0_48] : memref<1x8x32xf32, #tpu.memory_space<vmem>>, vector<1x8x32xf32>
    %84 = vector.shape_cast %83 : vector<1x8x32xf32> to vector<8x32xf32>
    %85 = vector.shape_cast %82 : vector<8x32xf32> to vector<1x8x32xf32>
    tpu.vector_store %arg14[%c0_46, %c0_47, %c0_48], %85 {strides = array<i32>} : memref<1x8x32xf32, #tpu.memory_space<vmem>>, vector<1x8x32xf32>,
    return
  }
  func.func @transform_0(%arg0: i32, %arg1: i32) -> (i32, i32, i32) {
    %c0_i32 = arith.constant 0 : i32
    %c0_i32_0 = arith.constant 0 : i32
    %c0_i32_1 = arith.constant 0 : i32
    return %arg0, %c0_i32, %c0_i32_0 : i32, i32, i32
  }
  func.func @transform_1(%arg0: i32, %arg1: i32) -> (i32, i32, i32) {
    %c0_i32 = arith.constant 0 : i32
    %c0_i32_0 = arith.constant 0 : i32
    %c0_i32_1 = arith.constant 0 : i32
    return %c0_i32, %arg1, %c0_i32_0 : i32, i32, i32
  }
  func.func @transform_2(%arg0: i32, %arg1: i32) -> (i32, i32, i32) {
    %c0_i32 = arith.constant 0 : i32
    %c0_i32_0 = arith.constant 0 : i32
    %c0_i32_1 = arith.constant 0 : i32
    %c0_i32_2 = arith.constant 0 : i32
    return %c0_i32, %c0_i32_0, %c0_i32_1 : i32, i32, i32
  }
  func.func @transform_3(%arg0: i32, %arg1: i32) -> (i32, i32) {
    %c0_i32 = arith.constant 0 : i32
    %c0_i32_0 = arith.constant 0 : i32
    %c0_i32_1 = arith.constant 0 : i32
    return %c0_i32, %c0_i32_0 : i32, i32
  }
  func.func @transform_4(%arg0: i32, %arg1: i32) -> (i32, i32) {
    %c0_i32 = arith.constant 0 : i32
    %c0_i32_0 = arith.constant 0 : i32
    %c0_i32_1 = arith.constant 0 : i32
    return %c0_i32, %c0_i32_0 : i32, i32
  }
  func.func @transform_5(%arg0: i32, %arg1: i32) -> (i32, i32) {
    %c0_i32 = arith.constant 0 : i32
    %c0_i32_0 = arith.constant 0 : i32
    %c0_i32_1 = arith.constant 0 : i32
    return %c0_i32, %c0_i32_0 : i32, i32
  }
  func.func @transform_6(%arg0: i32, %arg1: i32) -> (i32, i32) {
    %c0_i32 = arith.constant 0 : i32
    %c0_i32_0 = arith.constant 0 : i32
    %c0_i32_1 = arith.constant 0 : i32
    return %c0_i32, %c0_i32_0 : i32, i32
  }
  func.func @transform_7(%arg0: i32, %arg1: i32) -> (i32, i32) {
    %c0_i32 = arith.constant 0 : i32
    %c0_i32_0 = arith.constant 0 : i32
    %c0_i32_1 = arith.constant 0 : i32
    return %c0_i32, %c0_i32_0 : i32, i32
  }
  func.func @transform_8(%arg0: i32, %arg1: i32) -> (i32, i32) {
    %c0_i32 = arith.constant 0 : i32
    %c0_i32_0 = arith.constant 0 : i32
    %c0_i32_1 = arith.constant 0 : i32
    return %c0_i32, %c0_i32_0 : i32, i32
  }
  func.func @transform_9(%arg0: i32, %arg1: i32) -> (i32, i32) {
    %c0_i32 = arith.constant 0 : i32
    %c0_i32_0 = arith.constant 0 : i32
    %c0_i32_1 = arith.constant 0 : i32
    return %c0_i32, %c0_i32_0 : i32, i32
  }
  func.func @transform_10(%arg0: i32, %arg1: i32) -> (i32, i32) {
    %c0_i32 = arith.constant 0 : i32
    %c0_i32_0 = arith.constant 0 : i32
    %c0_i32_1 = arith.constant 0 : i32
    return %c0_i32, %c0_i32_0 : i32, i32
  }
  func.func @transform_11(%arg0: i32, %arg1: i32) -> (i32, i32) {
    %c0_i32 = arith.constant 0 : i32
    %c0_i32_0 = arith.constant 0 : i32
    %c0_i32_1 = arith.constant 0 : i32
    return %c0_i32, %c0_i32_0 : i32, i32
  }
  func.func @transform_12(%arg0: i32, %arg1: i32) -> (i32, i32, i32) {
    %c0_i32 = arith.constant 0 : i32
    %c0_i32_0 = arith.constant 0 : i32
    return %arg0, %arg1, %c0_i32 : i32, i32, i32
  }
}

</mosaic_0001>

<llo_original>
// kernel: tpu_custom_call.1
$region0: #{tpu_custom_call.1}
  #allocation0 [shape = 'u32[]', space=smem, size = 0x4, offset = 0x4, fixed_abs, tag = 'smem constant byte address 0x4 - core index']
  #allocation1 [shape = 'u32[144,128]{1,0:T(1,128)}', space=vmem, size = 0x12000, scoped, tag = 'internal scratch']
  #allocation2 [shape = 'bf16[2,8,32]{2,1,0:T(8,128)(2,1)}', space=vmem, size = 0x1000, scoped, tag = 'scratch operand']
  %s0 = inlined_call_operand.vmem [shape: f32[2,8,32], index: 0, kind: input, shape index: {}]
  %s1 = inlined_call_operand.vmem [shape: bf16[2,8,8], index: 1, kind: input, shape index: {}]
  %s2 = inlined_call_operand.vmem [shape: bf16[2,32,32], index: 2, kind: input, shape index: {}]
  %s3 = inlined_call_operand.vmem [shape: f32[1,32], index: 3, kind: input, shape index: {}]
  %s4 = inlined_call_operand.vmem [shape: f32[1,32], index: 4, kind: input, shape index: {}]
  %s5 = inlined_call_operand.vmem [shape: f32[1,32], index: 5, kind: input, shape index: {}]
  %s6 = inlined_call_operand.vmem [shape: bf16[32,128], index: 6, kind: input, shape index: {}]
  %s7 = inlined_call_operand.vmem [shape: f32[1,128], index: 7, kind: input, shape index: {}]
  %s8 = inlined_call_operand.vmem [shape: bf16[128,32], index: 8, kind: input, shape index: {}]
  %s9 = inlined_call_operand.vmem [shape: f32[1,32], index: 9, kind: input, shape index: {}]
  %s10 = inlined_call_operand.vmem [shape: f32[1,32], index: 10, kind: input, shape index: {}]
  %s11 = inlined_call_operand.vmem [shape: f32[1,32], index: 11, kind: input, shape index: {}]
  %s12 = inlined_call_operand.hbm [shape: f32[2,8,32], index: 12, kind: output, shape index: {}]
  %s13 = sld [smem:[#allocation0]]
  $region85: #{tpu_custom_call.1} parent=0
    _
  %s15 = ssub.s32 1, %s13
  %s16 = scalar_select 0, %s15, %s13
  $region1: #{tpu_custom_call.1} parent=0
    #allocation3 [shape = 'u8[8192]{0}', space=vmem, size = 0x2000, scoped, tag = 'output window, operand 0']
    #allocation4 [shape = 's32[2]{0}', space=sflag, size = 0x8, scoped, tag = 'scoped memory for tpu_custom_call.1']
    %17 = vsyncpa [#allocation4], 0
    %s18 = scalar_lea.sflag [#allocation4], 1
    %19 = vsyncpa %s18, 0
    loop: start=0, step=1, limit=4
    $region2: #{tpu_custom_call.1} parent=1 // loop_pre_header
      _
    $region3: #{tpu_custom_call.1} parent=1 // loop_header
      %s21 = sphi 0, %s25
      %p22 = scmp.ge.s32.totalorder %s21, 4
      %s28 = sphi 0, %s40
      %s29 = sphi 0, %s36
      %s30 = sphi 0, %s28
      %s31 = sphi 0, %s29
      %s32 = sphi 0, %s30
      %s33 = sphi 0, %s31
      %s43 = sphi 0, %s45
      %s46 = sphi 0, %s43
      %s47 = sphi 0, %s46
      %s63 = sphi 0, %s47
      %s69 = sphi 0, %s71
      %s72 = sphi 0, %s69
      %s73 = sphi 0, %s72
      %s89 = sphi 0, %s73
      %s93 = sphi 0, %s93
      %s95 = sphi 0, %s93
      %s96 = sphi 0, %s95
      %s110 = sphi 0, %s96
      %s114 = sphi 0, %s114
      %s116 = sphi 0, %s114
      %s117 = sphi 0, %s116
      %s131 = sphi 0, %s117
      %s135 = sphi 0, %s135
      %s137 = sphi 0, %s135
      %s138 = sphi 0, %s137
      %s152 = sphi 0, %s138
      %s156 = sphi 0, %s156
      %s158 = sphi 0, %s156
      %s159 = sphi 0, %s158
      %s173 = sphi 0, %s159
      %s177 = sphi 0, %s177
      %s179 = sphi 0, %s177
      %s180 = sphi 0, %s179
      %s194 = sphi 0, %s180
      %s198 = sphi 0, %s198
      %s200 = sphi 0, %s198
      %s201 = sphi 0, %s200
      %s215 = sphi 0, %s201
      %s219 = sphi 0, %s219
      %s221 = sphi 0, %s219
      %s222 = sphi 0, %s221
      %s236 = sphi 0, %s222
      %s240 = sphi 0, %s240
      %s242 = sphi 0, %s240
      %s243 = sphi 0, %s242
      %s257 = sphi 0, %s243
      %s261 = sphi 0, %s261
      %s263 = sphi 0, %s261
      %s264 = sphi 0, %s263
      %s278 = sphi 0, %s264
      %s282 = sphi 0, %s282
      %s284 = sphi 0, %s282
      %s285 = sphi 0, %s284
      %s299 = sphi 0, %s285
      %s307 = sphi 0, %s309
      %s310 = sphi 0, %s307
      %s311 = sphi 0, %s310
      %s327 = sphi 0, %s311
    $region4: #{tpu_custom_call.1} parent=1 // loop_header_branch
      %24 = sbr.rel (%p22) target = $region8
    $region5: #{tpu_custom_call.1} parent=1 // loop_body
      %s26 = ssub.s32 %s21, 1
      %s27 = ssub.s32 %s21, 2
      %s34 = sadd.s32 1, %s29
      %p35 = scmp.ge.s32.totalorder %s34, 1
      %s36 = scalar_select %p35, 0, %s34
      %s37 = sadd.s32 1, %s28
      %s38 = scalar_select %p35, %s37, %s28
      %p39 = scmp.ge.s32.totalorder %s38, 2
      %s40 = scalar_select %p39, 0, %s38
      %s41 = ssub.s32 %s28, %s40
      %p42 = scmp.eq.s32.totalorder %s41, 0
      %s44 = sadd.s32 %s43, 1
      %s45 = scalar_select %p42, %s43, %s44
      %p48 = pneg %p42
      %p49 = scmp.eq.s32.totalorder %s21, 1
      %p50 = por %p48, %p49
      %p51 = scmp.ne.s32.totalorder %s43, %s46
      %p52 = scmp.eq.s32.totalorder %s21, 0
      %p53 = por %p51, %p52
      %p54 = scmp.ne.s32.totalorder %s43, %s46
      %p55 = scmp.eq.s32.totalorder %s26, 1
      %p56 = por %p54, %p55
      %p57 = scmp.ne.s32.totalorder %s46, %s47
      %p58 = scmp.eq.s32.totalorder %s26, 0
      %p59 = por %p57, %p58
      %p60 = scmp.ne.s32.totalorder %s46, %s47
      %p61 = scmp.eq.s32.totalorder %s27, 1
      %p62 = por %p60, %p61
      %p64 = scmp.ne.s32.totalorder %s47, %s63
      %p65 = scmp.eq.s32.totalorder %s27, 0
      %p66 = por %p64, %p65
      %s67 = ssub.s32 %s29, %s36
      %p68 = scmp.eq.s32.totalorder %s67, 0
      %s70 = sadd.s32 %s69, 1
      %s71 = scalar_select %p68, %s69, %s70
      %p74 = pneg %p68
      %p75 = scmp.eq.s32.totalorder %s21, 1
      %p76 = por %p74, %p75
      %p77 = scmp.ne.s32.totalorder %s69, %s72
      %p78 = scmp.eq.s32.totalorder %s21, 0
      %p79 = por %p77, %p78
      %p80 = scmp.ne.s32.totalorder %s69, %s72
      %p81 = scmp.eq.s32.totalorder %s26, 1
      %p82 = por %p80, %p81
      %p83 = scmp.ne.s32.totalorder %s72, %s73
      %p84 = scmp.eq.s32.totalorder %s26, 0
      %p85 = por %p83, %p84
      %p86 = scmp.ne.s32.totalorder %s72, %s73
      %p87 = scmp.eq.s32.totalorder %s27, 1
      %p88 = por %p86, %p87
      %p90 = scmp.ne.s32.totalorder %s73, %s89
      %p91 = scmp.eq.s32.totalorder %s27, 0
      %p92 = por %p90, %p91
      %s94 = sadd.s32 %s93, 1
      %p97 = scmp.eq.s32.totalorder %s21, 1
      %p98 = scmp.ne.s32.totalorder %s93, %s95
      %p99 = scmp.eq.s32.totalorder %s21, 0
      %p100 = por %p98, %p99
      %p101 = scmp.ne.s32.totalorder %s93, %s95
      %p102 = scmp.eq.s32.totalorder %s26, 1
      %p103 = por %p101, %p102
      %p104 = scmp.ne.s32.totalorder %s95, %s96
      %p105 = scmp.eq.s32.totalorder %s26, 0
      %p106 = por %p104, %p105
      %p107 = scmp.ne.s32.totalorder %s95, %s96
      %p108 = scmp.eq.s32.totalorder %s27, 1
      %p109 = por %p107, %p108
      %p111 = scmp.ne.s32.totalorder %s96, %s110
      %p112 = scmp.eq.s32.totalorder %s27, 0
      %p113 = por %p111, %p112
      %s115 = sadd.s32 %s114, 1
      %p118 = scmp.eq.s32.totalorder %s21, 1
      %p119 = scmp.ne.s32.totalorder %s114, %s116
      %p120 = scmp.eq.s32.totalorder %s21, 0
      %p121 = por %p119, %p120
      %p122 = scmp.ne.s32.totalorder %s114, %s116
      %p123 = scmp.eq.s32.totalorder %s26, 1
      %p124 = por %p122, %p123
      %p125 = scmp.ne.s32.totalorder %s116, %s117
      %p126 = scmp.eq.s32.totalorder %s26, 0
      %p127 = por %p125, %p126
      %p128 = scmp.ne.s32.totalorder %s116, %s117
      %p129 = scmp.eq.s32.totalorder %s27, 1
      %p130 = por %p128, %p129
      %p132 = scmp.ne.s32.totalorder %s117, %s131
      %p133 = scmp.eq.s32.totalorder %s27, 0
      %p134 = por %p132, %p133
      %s136 = sadd.s32 %s135, 1
      %p139 = scmp.eq.s32.totalorder %s21, 1
      %p140 = scmp.ne.s32.totalorder %s135, %s137
      %p141 = scmp.eq.s32.totalorder %s21, 0
      %p142 = por %p140, %p141
      %p143 = scmp.ne.s32.totalorder %s135, %s137
      %p144 = scmp.eq.s32.totalorder %s26, 1
      %p145 = por %p143, %p144
      %p146 = scmp.ne.s32.totalorder %s137, %s138
      %p147 = scmp.eq.s32.totalorder %s26, 0
      %p148 = por %p146, %p147
      %p149 = scmp.ne.s32.totalorder %s137, %s138
      %p150 = scmp.eq.s32.totalorder %s27, 1
      %p151 = por %p149, %p150
      %p153 = scmp.ne.s32.totalorder %s138, %s152
      %p154 = scmp.eq.s32.totalorder %s27, 0
      %p155 = por %p153, %p154
      %s157 = sadd.s32 %s156, 1
      %p160 = scmp.eq.s32.totalorder %s21, 1
      %p161 = scmp.ne.s32.totalorder %s156, %s158
      %p162 = scmp.eq.s32.totalorder %s21, 0
      %p163 = por %p161, %p162
      %p164 = scmp.ne.s32.totalorder %s156, %s158
      %p165 = scmp.eq.s32.totalorder %s26, 1
      %p166 = por %p164, %p165
      %p167 = scmp.ne.s32.totalorder %s158, %s159
      %p168 = scmp.eq.s32.totalorder %s26, 0
      %p169 = por %p167, %p168
      %p170 = scmp.ne.s32.totalorder %s158, %s159
      %p171 = scmp.eq.s32.totalorder %s27, 1
      %p172 = por %p170, %p171
      %p174 = scmp.ne.s32.totalorder %s159, %s173
      %p175 = scmp.eq.s32.totalorder %s27, 0
      %p176 = por %p174, %p175
      %s178 = sadd.s32 %s177, 1
      %p181 = scmp.eq.s32.totalorder %s21, 1
      %p182 = scmp.ne.s32.totalorder %s177, %s179
      %p183 = scmp.eq.s32.totalorder %s21, 0
      %p184 = por %p182, %p183
      %p185 = scmp.ne.s32.totalorder %s177, %s179
      %p186 = scmp.eq.s32.totalorder %s26, 1
      %p187 = por %p185, %p186
      %p188 = scmp.ne.s32.totalorder %s179, %s180
      %p189 = scmp.eq.s32.totalorder %s26, 0
      %p190 = por %p188, %p189
      %p191 = scmp.ne.s32.totalorder %s179, %s180
      %p192 = scmp.eq.s32.totalorder %s27, 1
      %p193 = por %p191, %p192
      %p195 = scmp.ne.s32.totalorder %s180, %s194
      %p196 = scmp.eq.s32.totalorder %s27, 0
      %p197 = por %p195, %p196
      %s199 = sadd.s32 %s198, 1
      %p202 = scmp.eq.s32.totalorder %s21, 1
      %p203 = scmp.ne.s32.totalorder %s198, %s200
      %p204 = scmp.eq.s32.totalorder %s21, 0
      %p205 = por %p203, %p204
      %p206 = scmp.ne.s32.totalorder %s198, %s200
      %p207 = scmp.eq.s32.totalorder %s26, 1
      %p208 = por %p206, %p207
      %p209 = scmp.ne.s32.totalorder %s200, %s201
      %p210 = scmp.eq.s32.totalorder %s26, 0
      %p211 = por %p209, %p210
      %p212 = scmp.ne.s32.totalorder %s200, %s201
      %p213 = scmp.eq.s32.totalorder %s27, 1
      %p214 = por %p212, %p213
      %p216 = scmp.ne.s32.totalorder %s201, %s215
      %p217 = scmp.eq.s32.totalorder %s27, 0
      %p218 = por %p216, %p217
      %s220 = sadd.s32 %s219, 1
      %p223 = scmp.eq.s32.totalorder %s21, 1
      %p224 = scmp.ne.s32.totalorder %s219, %s221
      %p225 = scmp.eq.s32.totalorder %s21, 0
      %p226 = por %p224, %p225
      %p227 = scmp.ne.s32.totalorder %s219, %s221
      %p228 = scmp.eq.s32.totalorder %s26, 1
      %p229 = por %p227, %p228
      %p230 = scmp.ne.s32.totalorder %s221, %s222
      %p231 = scmp.eq.s32.totalorder %s26, 0
      %p232 = por %p230, %p231
      %p233 = scmp.ne.s32.totalorder %s221, %s222
      %p234 = scmp.eq.s32.totalorder %s27, 1
      %p235 = por %p233, %p234
      %p237 = scmp.ne.s32.totalorder %s222, %s236
      %p238 = scmp.eq.s32.totalorder %s27, 0
      %p239 = por %p237, %p238
      %s241 = sadd.s32 %s240, 1
      %p244 = scmp.eq.s32.totalorder %s21, 1
      %p245 = scmp.ne.s32.totalorder %s240, %s242
      %p246 = scmp.eq.s32.totalorder %s21, 0
      %p247 = por %p245, %p246
      %p248 = scmp.ne.s32.totalorder %s240, %s242
      %p249 = scmp.eq.s32.totalorder %s26, 1
      %p250 = por %p248, %p249
      %p251 = scmp.ne.s32.totalorder %s242, %s243
      %p252 = scmp.eq.s32.totalorder %s26, 0
      %p253 = por %p251, %p252
      %p254 = scmp.ne.s32.totalorder %s242, %s243
      %p255 = scmp.eq.s32.totalorder %s27, 1
      %p256 = por %p254, %p255
      %p258 = scmp.ne.s32.totalorder %s243, %s257
      %p259 = scmp.eq.s32.totalorder %s27, 0
      %p260 = por %p258, %p259
      %s262 = sadd.s32 %s261, 1
      %p265 = scmp.eq.s32.totalorder %s21, 1
      %p266 = scmp.ne.s32.totalorder %s261, %s263
      %p267 = scmp.eq.s32.totalorder %s21, 0
      %p268 = por %p266, %p267
      %p269 = scmp.ne.s32.totalorder %s261, %s263
      %p270 = scmp.eq.s32.totalorder %s26, 1
      %p271 = por %p269, %p270
      %p272 = scmp.ne.s32.totalorder %s263, %s264
      %p273 = scmp.eq.s32.totalorder %s26, 0
      %p274 = por %p272, %p273
      %p275 = scmp.ne.s32.totalorder %s263, %s264
      %p276 = scmp.eq.s32.totalorder %s27, 1
      %p277 = por %p275, %p276
      %p279 = scmp.ne.s32.totalorder %s264, %s278
      %p280 = scmp.eq.s32.totalorder %s27, 0
      %p281 = por %p279, %p280
      %s283 = sadd.s32 %s282, 1
      %p286 = scmp.eq.s32.totalorder %s21, 1
      %p287 = scmp.ne.s32.totalorder %s282, %s284
      %p288 = scmp.eq.s32.totalorder %s21, 0
      %p289 = por %p287, %p288
      %p290 = scmp.ne.s32.totalorder %s282, %s284
      %p291 = scmp.eq.s32.totalorder %s26, 1
      %p292 = por %p290, %p291
      %p293 = scmp.ne.s32.totalorder %s284, %s285
      %p294 = scmp.eq.s32.totalorder %s26, 0
      %p295 = por %p293, %p294
      %p296 = scmp.ne.s32.totalorder %s284, %s285
      %p297 = scmp.eq.s32.totalorder %s27, 1
      %p298 = por %p296, %p297
      %p300 = scmp.ne.s32.totalorder %s285, %s299
      %p301 = scmp.eq.s32.totalorder %s27, 0
      %p302 = por %p300, %p301
      %s303 = ssub.s32 %s28, %s40
      %s304 = ssub.s32 %s29, %s36
      %s305 = sor.u32 %s303, %s304
      %p306 = scmp.eq.s32.totalorder %s305, 0
      %s308 = sadd.s32 %s307, 1
      %s309 = scalar_select %p306, %s307, %s308
      %p312 = pneg %p306
      %p313 = scmp.eq.s32.totalorder %s21, 1
      %p314 = por %p312, %p313
      %p315 = scmp.ne.s32.totalorder %s307, %s310
      %p316 = scmp.eq.s32.totalorder %s21, 0
      %p317 = por %p315, %p316
      %p318 = scmp.ne.s32.totalorder %s307, %s310
      %p319 = scmp.eq.s32.totalorder %s26, 1
      %p320 = por %p318, %p319
      %p321 = scmp.ne.s32.totalorder %s310, %s311
      %p322 = scmp.eq.s32.totalorder %s26, 0
      %p323 = por %p321, %p322
      %p324 = scmp.ne.s32.totalorder %s310, %s311
      %p325 = scmp.eq.s32.totalorder %s27, 1
      %p326 = por %p324, %p325
      %p328 = scmp.ne.s32.totalorder %s311, %s327
      %p329 = scmp.eq.s32.totalorder %s27, 0
      %p330 = por %p328, %p329
      %p331 = scmp.le.s32.totalorder 1, %s21
      %p332 = scmp.lt.s32.totalorder %s21, 3
      %p333 = pnand %p331, %p332
      %p334 = pneg %p333
      // Predicated region
      $region9: #{tpu_custom_call.1} parent=5 // pred_check
        _
      $region10: #{tpu_custom_call.1} parent=5 // pred_check_branch
        %336 = sbr.rel (%p333) target = $region12
      $region11: #{tpu_custom_call.1} parent=5 // pred_region
        %s337 = ssub.s32 %s21, 1
        // Predicated region
        $region13: #{tpu_custom_call.1} parent=11 // pred_check
          %p338 = pneg %p85
        $region14: #{tpu_custom_call.1} parent=11 // pred_check_branch
          %340 = sbr.rel (%p338) target = $region16
        $region15: #{tpu_custom_call.1} parent=11 // pred_region
          %p341 = scmp.lt.s32.totalorder %s31, 0
          %s342 = scalar_select %p341, %s31, 0
          %s343 = smul.addr %s342, 4
          %s344 = scalar_lea.vmem %s1, %s343
        $region16: #{tpu_custom_call.1} parent=11 // pred_fallthru
          _
        // Predicated region
        $region17: #{tpu_custom_call.1} parent=11 // pred_check
          %p345 = pneg %p106
        $region18: #{tpu_custom_call.1} parent=11 // pred_check_branch
          %347 = sbr.rel (%p345) target = $region20
        $region19: #{tpu_custom_call.1} parent=11 // pred_region
          _
        $region20: #{tpu_custom_call.1} parent=11 // pred_fallthru
          _
        // Predicated region
        $region21: #{tpu_custom_call.1} parent=11 // pred_check
          %p348 = pneg %p127
        $region22: #{tpu_custom_call.1} parent=11 // pred_check_branch
          %350 = sbr.rel (%p348) target = $region24
        $region23: #{tpu_custom_call.1} parent=11 // pred_region
          _
        $region24: #{tpu_custom_call.1} parent=11 // pred_fallthru
          _
        // Predicated region
        $region25: #{tpu_custom_call.1} parent=11 // pred_check
          %p351 = pneg %p148
        $region26: #{tpu_custom_call.1} parent=11 // pred_check_branch
          %353 = sbr.rel (%p351) target = $region28
        $region27: #{tpu_custom_call.1} parent=11 // pred_region
          _
        $region28: #{tpu_custom_call.1} parent=11 // pred_fallthru
          _
        // Predicated region
        $region29: #{tpu_custom_call.1} parent=11 // pred_check
          %p354 = pneg %p169
        $region30: #{tpu_custom_call.1} parent=11 // pred_check_branch
          %356 = sbr.rel (%p354) target = $region32
        $region31: #{tpu_custom_call.1} parent=11 // pred_region
          _
        $region32: #{tpu_custom_call.1} parent=11 // pred_fallthru
          _
        // Predicated region
        $region33: #{tpu_custom_call.1} parent=11 // pred_check
          %p357 = pneg %p190
        $region34: #{tpu_custom_call.1} parent=11 // pred_check_branch
          %359 = sbr.rel (%p357) target = $region36
        $region35: #{tpu_custom_call.1} parent=11 // pred_region
          _
        $region36: #{tpu_custom_call.1} parent=11 // pred_fallthru
          _
        // Predicated region
        $region37: #{tpu_custom_call.1} parent=11 // pred_check
          %p360 = pneg %p211
        $region38: #{tpu_custom_call.1} parent=11 // pred_check_branch
          %362 = sbr.rel (%p360) target = $region40
        $region39: #{tpu_custom_call.1} parent=11 // pred_region
          _
        $region40: #{tpu_custom_call.1} parent=11 // pred_fallthru
          _
        // Predicated region
        $region41: #{tpu_custom_call.1} parent=11 // pred_check
          %p363 = pneg %p232
        $region42: #{tpu_custom_call.1} parent=11 // pred_check_branch
          %365 = sbr.rel (%p363) target = $region44
        $region43: #{tpu_custom_call.1} parent=11 // pred_region
          _
        $region44: #{tpu_custom_call.1} parent=11 // pred_fallthru
          _
        // Predicated region
        $region45: #{tpu_custom_call.1} parent=11 // pred_check
          %p366 = pneg %p253
        $region46: #{tpu_custom_call.1} parent=11 // pred_check_branch
          %368 = sbr.rel (%p366) target = $region48
        $region47: #{tpu_custom_call.1} parent=11 // pred_region
          _
        $region48: #{tpu_custom_call.1} parent=11 // pred_fallthru
          _
        // Predicated region
        $region49: #{tpu_custom_call.1} parent=11 // pred_check
          %p369 = pneg %p274
        $region50: #{tpu_custom_call.1} parent=11 // pred_check_branch
          %371 = sbr.rel (%p369) target = $region52
        $region51: #{tpu_custom_call.1} parent=11 // pred_region
          _
        $region52: #{tpu_custom_call.1} parent=11 // pred_fallthru
          _
        // Predicated region
        $region53: #{tpu_custom_call.1} parent=11 // pred_check
          %p372 = pneg %p295
        $region54: #{tpu_custom_call.1} parent=11 // pred_check_branch
          %374 = sbr.rel (%p372) target = $region56
        $region55: #{tpu_custom_call.1} parent=11 // pred_region
          _
        $region56: #{tpu_custom_call.1} parent=11 // pred_fallthru
          _
      $region12: #{tpu_custom_call.1} parent=5 // pred_fallthru
        _
      %p375 = scmp.lt.s32.totalorder %s21, 2
      // Predicated region
      $region57: #{tpu_custom_call.1} parent=5 // pred_check
        %p376 = pneg %p375
      $region58: #{tpu_custom_call.1} parent=5 // pred_check_branch
        %378 = sbr.rel (%p376) target = $region60
      $region59: #{tpu_custom_call.1} parent=5 // pred_region
        // Predicated region
        $region61: #{tpu_custom_call.1} parent=59 // pred_check
          %p379 = pneg %p53
        $region62: #{tpu_custom_call.1} parent=59 // pred_check_branch
          %381 = sbr.rel (%p379) target = $region64
        $region63: #{tpu_custom_call.1} parent=59 // pred_region
          %p382 = scmp.lt.s32.totalorder %s28, 1
          %s383 = scalar_select %p382, %s28, 1
          %s384 = smul.addr %s383, 8
          %s385 = scalar_lea.vmem %s0, %s384
        $region64: #{tpu_custom_call.1} parent=59 // pred_fallthru
          _
      $region60: #{tpu_custom_call.1} parent=5 // pred_fallthru
        _
      %p386 = scmp.le.s32.totalorder 1, %s21
      %p387 = scmp.lt.s32.totalorder %s21, 3
      %p388 = pnand %p386, %p387
      %p389 = pneg %p388
      // Predicated region
      $region65: #{tpu_custom_call.1} parent=5 // pred_check
        _
      $region66: #{tpu_custom_call.1} parent=5 // pred_check_branch
        %391 = sbr.rel (%p388) target = $region68
      $region67: #{tpu_custom_call.1} parent=5 // pred_region
        %s392 = ssub.s32 %s21, 1
        %p393 = scmp.lt.s32.totalorder %s30, 1
        %s394 = scalar_select %p393, %s30, 1
        %s395 = smul.addr %s394, 8
        %s396 = scalar_lea.vmem %s0, %s395
        %p397 = pneg %p59
        %p398 = pneg %p56
        %p399 = scmp.lt.s32.totalorder %s31, 0
        %s400 = scalar_select %p399, %s31, 0
        %s401 = smul.addr %s400, 4
        %s402 = scalar_lea.vmem %s1, %s401
        %p403 = pneg %p85
        %p404 = pneg %p82
        %p405 = pneg %p106
        %p406 = pneg %p103
        %p407 = pneg %p127
        %p408 = pneg %p124
        %p409 = pneg %p148
        %p410 = pneg %p145
        %p411 = pneg %p169
        %p412 = pneg %p166
        %p413 = pneg %p190
        %p414 = pneg %p187
        %p415 = pneg %p211
        %p416 = pneg %p208
        %p417 = pneg %p232
        %p418 = pneg %p229
        %p419 = pneg %p253
        %p420 = pneg %p250
        %p421 = pneg %p274
        %p422 = pneg %p271
        %p423 = pneg %p295
        %p424 = pneg %p292
        %p425 = pneg %p323
        %p426 = pneg %p320
        %s427 = sand.u32 %s310, 1
        %s428 = scalar_lea.sflag [#allocation4], %s427
        %s429 = sand.u32 %s310, 1
        %s430 = smul.addr %s429, 8
        %s431 = scalar_lea.vmem [#allocation3], %s430
        %p432 = scmp.lt.s32.totalorder %s30, 1
        %s433 = scalar_select %p432, %s30, 1
        %s434 = smul.addr %s433, 8
        %s435 = scalar_lea.vmem %s0, %s434
        %p436 = scmp.lt.s32.totalorder %s31, 0
        %s437 = scalar_select %p436, %s31, 0
        %s438 = smul.addr %s437, 4
        %s439 = scalar_lea.vmem %s1, %s438
        %p441 = scmp.eq.s32.totalorder %s31, 0
        // Predicated region
        $region69: #{tpu_custom_call.1} parent=67 // pred_check
          %p442 = pneg %p441
        $region70: #{tpu_custom_call.1} parent=67 // pred_check_branch
          %444 = sbr.rel (%p442) target = $region72
        $region71: #{tpu_custom_call.1} parent=67 // pred_region
          %v445 = vld [vmem:[%s435] sm:$0xff]
          %v446 = vpack.c.bf16 %v445, %v445
          %v447 = vld [vmem:[%s2] sm:$0xf]
          %v448 = vld [vmem:[%s2 + $0x4] sm:$0xf]
          %v449 = vld [vmem:[%s2 + $0x8] sm:$0xf]
          %v450 = vld [vmem:[%s2 + $0xc] sm:$0xf]
          %v455 = vunpack.c.l.b16 %v447
          %v456 = vunpack.c.l.b16 %v448
          %v457 = vunpack.c.l.b16 %v449
          %v458 = vunpack.c.l.b16 %v450
          %v459 = vpack.c.b16 %v456, %v455
          %v460 = vpack.c.b16 %v458, %v457
          %vm463 = vcmask 261120
          %v465 = vsel %vm463, %v446, 0
          %467 = vmatprep.subr.bf16.mxu0 0
          %468 = vmatpush1.bf16.msra.mxu0 0
          %469 = vmatprep.subr.bf16.mxu0 0
          %470 = vmatpush1.bf16.msra.mxu0 0
          %471 = vmatprep.subr.bf16.mxu0 0
          %472 = vmatpush1.bf16.msra.mxu0 0
          %473 = vmatprep.subr.bf16.mxu0 0
          %474 = vmatpush1.bf16.msra.mxu0 0
          %475 = vmatprep.subr.bf16.mxu0 0
          %476 = vmatpush1.bf16.msra.mxu0 0
          %477 = vmatprep.subr.bf16.mxu0 0
          %478 = vmatpush1.bf16.msra.mxu0 0
          %479 = vmatprep.subr.bf16.mxu0 0
          %480 = vmatpush1.bf16.msra.mxu0 %v460
          %481 = vmatprep.subr.bf16.mxu0 0
          %482 = vmatpush1.bf16.msra.mxu0 %v459
          %483 = vmatprep.subr.bf16.mxu0 0
          %484 = vmatpush2.bf16.msra.mxu0 0
          %485 = vmatprep.subr.bf16.mxu0 0
          %486 = vmatpush2.bf16.msra.mxu0 0
          %487 = vmatprep.subr.bf16.mxu0 0
          %488 = vmatpush2.bf16.msra.mxu0 0
          %489 = vmatprep.subr.bf16.mxu0 0
          %490 = vmatpush2.bf16.msra.mxu0 0
          %491 = vmatprep.subr.bf16.mxu0 0
          %492 = vmatpush2.bf16.msra.mxu0 0
          %493 = vmatprep.subr.bf16.mxu0 0
          %494 = vmatpush2.bf16.msra.mxu0 0
          %495 = vmatprep.subr.bf16.mxu0 0
          %496 = vmatpush2.bf16.msra.mxu0 0
          %497 = vmatprep.subr.bf16.mxu0 0
          %498 = vmatpush2.bf16.msra.mxu0 0
          %499 = vmatprep.mubr.bf16.mxu0 0
          %500 = vmatmul.mubr.bf16.gmra.mxu0 %v465
          %v501 = vpop.f32.mrf.mxu0
          %v502 = vadd.f32 0.0, %v501
          %v503 = vpop.f32.mrf.mxu0
          %v504 = vpop.f32.mrf.mxu0
          %v505 = vpop.f32.mrf.mxu0
          %506 = vdwg.mxu0
          %v507 = vpack.c.bf16 %v502, %v502
          %vm508 = vcmask 257024
          %509 = vst.msk [vmem:[#allocation2] sm:$0xf] %vm508, %v507
          %s510 = scalar_lea.vmem %s2, 16
          %v511 = vld [vmem:[%s510] sm:$0xf]
          %v512 = vld [vmem:[%s510 + $0x4] sm:$0xf]
          %v513 = vld [vmem:[%s510 + $0x8] sm:$0xf]
          %v514 = vld [vmem:[%s510 + $0xc] sm:$0xf]
          %v519 = vunpack.c.l.b16 %v511
          %v520 = vunpack.c.l.b16 %v512
          %v521 = vunpack.c.l.b16 %v513
          %v522 = vunpack.c.l.b16 %v514
          %v523 = vpack.c.b16 %v520, %v519
          %v524 = vpack.c.b16 %v522, %v521
          %527 = vmatprep.subr.bf16.mxu0 0
          %528 = vmatpush1.bf16.msra.mxu0 0
          %529 = vmatprep.subr.bf16.mxu0 0
          %530 = vmatpush1.bf16.msra.mxu0 0
          %531 = vmatprep.subr.bf16.mxu0 0
          %532 = vmatpush1.bf16.msra.mxu0 0
          %533 = vmatprep.subr.bf16.mxu0 0
          %534 = vmatpush1.bf16.msra.mxu0 0
          %535 = vmatprep.subr.bf16.mxu0 0
          %536 = vmatpush1.bf16.msra.mxu0 0
          %537 = vmatprep.subr.bf16.mxu0 0
          %538 = vmatpush1.bf16.msra.mxu0 0
          %539 = vmatprep.subr.bf16.mxu0 0
          %540 = vmatpush1.bf16.msra.mxu0 %v524
          %541 = vmatprep.subr.bf16.mxu0 0
          %542 = vmatpush1.bf16.msra.mxu0 %v523
          %543 = vmatprep.subr.bf16.mxu0 0
          %544 = vmatpush2.bf16.msra.mxu0 0
          %545 = vmatprep.subr.bf16.mxu0 0
          %546 = vmatpush2.bf16.msra.mxu0 0
          %547 = vmatprep.subr.bf16.mxu0 0
          %548 = vmatpush2.bf16.msra.mxu0 0
          %549 = vmatprep.subr.bf16.mxu0 0
          %550 = vmatpush2.bf16.msra.mxu0 0
          %551 = vmatprep.subr.bf16.mxu0 0
          %552 = vmatpush2.bf16.msra.mxu0 0
          %553 = vmatprep.subr.bf16.mxu0 0
          %554 = vmatpush2.bf16.msra.mxu0 0
          %555 = vmatprep.subr.bf16.mxu0 0
          %556 = vmatpush2.bf16.msra.mxu0 0
          %557 = vmatprep.subr.bf16.mxu0 0
          %558 = vmatpush2.bf16.msra.mxu0 0
          %559 = vmatprep.mubr.bf16.mxu0 0
          %560 = vmatmul.mubr.bf16.gmra.mxu0 %v465
          %v561 = vpop.f32.mrf.mxu0
          %v562 = vadd.f32 0.0, %v561
          %v563 = vpop.f32.mrf.mxu0
          %v564 = vpop.f32.mrf.mxu0
          %v565 = vpop.f32.mrf.mxu0
          %566 = vdwg.mxu0
          %v567 = vpack.c.bf16 %v562, %v562
          %s568 = scalar_lea.vmem [#allocation2], 4
          %569 = vst.msk [vmem:[%s568] sm:$0xf] %vm508, %v567
        $region72: #{tpu_custom_call.1} parent=67 // pred_fallthru
          _
        %v570 = vld [vmem:[%s3] sm:$0x1]
        %v571 = vld [vmem:[%s4] sm:$0x1]
        %v572 = vld [vmem:[%s5] sm:$0x1]
        %v573 = vld [vmem:[%s10] sm:$0x1]
        %v574 = vld [vmem:[%s11] sm:$0x1]
        %v575 = vld [vmem:[%s7] sm:$0x1]
        %v576 = vld [vmem:[%s9] sm:$0x1]
        %v577 = vld [vmem:[%s6] sm:$0xf]
        %v578 = vld [vmem:[%s6 + $0x4] sm:$0xf]
        %v579 = vld [vmem:[%s6 + $0x8] sm:$0xf]
        %v580 = vld [vmem:[%s6 + $0xc] sm:$0xf]
        %v581 = vld [vmem:[%s8] sm:$0xf]
        %v582 = vld [vmem:[%s8 + $0x4] sm:$0xf]
        %v583 = vld [vmem:[%s8 + $0x8] sm:$0xf]
        %v584 = vld [vmem:[%s8 + $0xc] sm:$0xf]
        %v585 = vld [vmem:[%s8 + $0x10] sm:$0xf]
        %v586 = vld [vmem:[%s8 + $0x14] sm:$0xf]
        %v587 = vld [vmem:[%s8 + $0x18] sm:$0xf]
        %v588 = vld [vmem:[%s8 + $0x1c] sm:$0xf]
        %v589 = vld [vmem:[%s8 + $0x20] sm:$0xf]
        %v590 = vld [vmem:[%s8 + $0x24] sm:$0xf]
        %v591 = vld [vmem:[%s8 + $0x28] sm:$0xf]
        %v592 = vld [vmem:[%s8 + $0x2c] sm:$0xf]
        %v593 = vld [vmem:[%s8 + $0x30] sm:$0xf]
        %v594 = vld [vmem:[%s8 + $0x34] sm:$0xf]
        %v595 = vld [vmem:[%s8 + $0x38] sm:$0xf]
        %v596 = vld [vmem:[%s8 + $0x3c] sm:$0xf]
        %v597 = vld [vmem:[#allocation2] sm:$0xf]
        %v598 = vld [vmem:[%s439] sm:$0xf]
        %s599 = scalar_lea.vmem [#allocation2], 4
        %v600 = vld [vmem:[%s599] sm:$0xf]
        %s601 = scalar_lea.vmem %s439, 4
        %v602 = vld [vmem:[%s601] sm:$0xf]
        %vm603 = vcmask 64512
        %v605 = vsel %vm603, %v602, 0
        %vm607 = vcmask 1043456
        %v609 = vsel %vm607, %v600, 0
        %611 = vmatprep.subr.bf16.mxu0 0
        %612 = vmatpush1.bf16.msra.mxu0 0
        %613 = vmatprep.subr.bf16.mxu0 0
        %614 = vmatpush1.bf16.msra.mxu0 0
        %615 = vmatprep.subr.bf16.mxu0 0
        %616 = vmatpush1.bf16.msra.mxu0 0
        %617 = vmatprep.subr.bf16.mxu0 0
        %618 = vmatpush1.bf16.msra.mxu0 0
        %619 = vmatprep.subr.bf16.mxu0 0
        %620 = vmatpush1.bf16.msra.mxu0 0
        %621 = vmatprep.subr.bf16.mxu0 0
        %622 = vmatpush1.bf16.msra.mxu0 0
        %623 = vmatprep.subr.bf16.mxu0 0
        %624 = vmatpush1.bf16.msra.mxu0 0
        %625 = vmatprep.subr.bf16.mxu0 0
        %626 = vmatpush1.bf16.msra.mxu0 %v609
        %627 = vmatprep.subr.bf16.mxu0 0
        %628 = vmatpush2.bf16.msra.mxu0 0
        %629 = vmatprep.subr.bf16.mxu0 0
        %630 = vmatpush2.bf16.msra.mxu0 0
        %631 = vmatprep.subr.bf16.mxu0 0
        %632 = vmatpush2.bf16.msra.mxu0 0
        %633 = vmatprep.subr.bf16.mxu0 0
        %634 = vmatpush2.bf16.msra.mxu0 0
        %635 = vmatprep.subr.bf16.mxu0 0
        %636 = vmatpush2.bf16.msra.mxu0 0
        %637 = vmatprep.subr.bf16.mxu0 0
        %638 = vmatpush2.bf16.msra.mxu0 0
        %639 = vmatprep.subr.bf16.mxu0 0
        %640 = vmatpush2.bf16.msra.mxu0 0
        %641 = vmatprep.subr.bf16.mxu0 0
        %642 = vmatpush2.bf16.msra.mxu0 0
        %643 = vmatprep.mubr.bf16.mxu0 0
        %644 = vmatmul.mubr.bf16.gmra.mxu0 %v605
        %v645 = vpop.f32.mrf.mxu0
        %v646 = vadd.f32 0.0, %v645
        %v647 = vpop.f32.mrf.mxu0
        %v648 = vpop.f32.mrf.mxu0
        %v649 = vpop.f32.mrf.mxu0
        %650 = vdwg.mxu0
        %v652 = vsel %vm603, %v598, 0
        %v655 = vsel %vm607, %v597, 0
        %657 = vmatprep.subr.bf16.mxu0 0
        %658 = vmatpush1.bf16.msra.mxu0 0
        %659 = vmatprep.subr.bf16.mxu0 0
        %660 = vmatpush1.bf16.msra.mxu0 0
        %661 = vmatprep.subr.bf16.mxu0 0
        %662 = vmatpush1.bf16.msra.mxu0 0
        %663 = vmatprep.subr.bf16.mxu0 0
        %664 = vmatpush1.bf16.msra.mxu0 0
        %665 = vmatprep.subr.bf16.mxu0 0
        %666 = vmatpush1.bf16.msra.mxu0 0
        %667 = vmatprep.subr.bf16.mxu0 0
        %668 = vmatpush1.bf16.msra.mxu0 0
        %669 = vmatprep.subr.bf16.mxu0 0
        %670 = vmatpush1.bf16.msra.mxu0 0
        %671 = vmatprep.subr.bf16.mxu0 0
        %672 = vmatpush1.bf16.msra.mxu0 %v655
        %673 = vmatprep.subr.bf16.mxu0 0
        %674 = vmatpush2.bf16.msra.mxu0 0
        %675 = vmatprep.subr.bf16.mxu0 0
        %676 = vmatpush2.bf16.msra.mxu0 0
        %677 = vmatprep.subr.bf16.mxu0 0
        %678 = vmatpush2.bf16.msra.mxu0 0
        %679 = vmatprep.subr.bf16.mxu0 0
        %680 = vmatpush2.bf16.msra.mxu0 0
        %681 = vmatprep.subr.bf16.mxu0 0
        %682 = vmatpush2.bf16.msra.mxu0 0
        %683 = vmatprep.subr.bf16.mxu0 0
        %684 = vmatpush2.bf16.msra.mxu0 0
        %685 = vmatprep.subr.bf16.mxu0 0
        %686 = vmatpush2.bf16.msra.mxu0 0
        %687 = vmatprep.subr.bf16.mxu0 0
        %688 = vmatpush2.bf16.msra.mxu0 0
        %689 = vmatprep.mubr.bf16.mxu0 0
        %690 = vmatmul.mubr.bf16.gmra.mxu0 %v652
        %v691 = vpop.f32.mrf.mxu0
        %v692 = vadd.f32 %v646, %v691
        %v693 = vpop.f32.mrf.mxu0
        %v694 = vpop.f32.mrf.mxu0
        %v695 = vpop.f32.mrf.mxu0
        %696 = vdwg.mxu0
        %v697 = vld [vmem:[%s435] sm:$0xff]
        %v698 = vadd.f32 %v697, %v692
        %v700 = vlaneseq
        %v701 = vshrl.u32 %v700, 7
        %v702 = vsub.s32 0, %v701
        %v703 = vrot.slane %v570, %v702
        %v705 = vadd.f32 %v698, %v703
        %vm706 = vcmask 261120
        %v707 = vsel %vm706, %v705, 0.0
        %708 = vadd.xlane.f32.xlu0 %v707
        %v709 = vpop.xlane.xlu0 %708
        %v710 = vrcp.pop 32.0
        %v711 = vmul.f32 %v709, %v710
        %v712 = vsub.f32 %v705, %v711
        %v713 = vmul.f32 %v712, %v712
        %v714 = vsel %vm706, %v713, 0.0
        %715 = vadd.xlane.f32.xlu0 %v714
        %v716 = vpop.xlane.xlu0 %715
        %v717 = vmul.f32 %v716, %v710
        %v718 = vadd.f32 %v717, 1e-05
        %v719 = vrsqrt.pop %v718
        %v720 = vmul.f32 %v712, %v719
        %v722 = vlaneseq
        %v723 = vshrl.u32 %v722, 7
        %v724 = vsub.s32 0, %v723
        %v725 = vrot.slane %v571, %v724
        %v727 = vmul.f32 %v720, %v725
        %v729 = vlaneseq
        %v730 = vshrl.u32 %v729, 7
        %v731 = vsub.s32 0, %v730
        %v732 = vrot.slane %v572, %v731
        %v734 = vadd.f32 %v727, %v732
        %v735 = vpack.c.bf16 %v734, %v734
        %v737 = vlaneseq
        %v738 = vshrl.u32 %v737, 7
        %v739 = vsub.s32 0, %v738
        %v740 = vrot.slane %v575, %v739
        %v746 = vunpack.c.l.b16 %v577
        %v747 = vunpack.c.l.b16 %v578
        %v748 = vunpack.c.l.b16 %v579
        %v749 = vunpack.c.l.b16 %v580
        %v750 = vpack.c.b16 %v747, %v746
        %v751 = vpack.c.b16 %v749, %v748
        %v755 = vsel %vm706, %v735, 0
        %757 = vmatprep.subr.bf16.mxu0 0
        %758 = vmatpush1.bf16.msra.mxu0 0
        %759 = vmatprep.subr.bf16.mxu0 0
        %760 = vmatpush1.bf16.msra.mxu0 0
        %761 = vmatprep.subr.bf16.mxu0 0
        %762 = vmatpush1.bf16.msra.mxu0 0
        %763 = vmatprep.subr.bf16.mxu0 0
        %764 = vmatpush1.bf16.msra.mxu0 0
        %765 = vmatprep.subr.bf16.mxu0 0
        %766 = vmatpush1.bf16.msra.mxu0 0
        %767 = vmatprep.subr.bf16.mxu0 0
        %768 = vmatpush1.bf16.msra.mxu0 0
        %769 = vmatprep.subr.bf16.mxu0 0
        %770 = vmatpush1.bf16.msra.mxu0 %v751
        %771 = vmatprep.subr.bf16.mxu0 0
        %772 = vmatpush1.bf16.msra.mxu0 %v750
        %773 = vmatprep.subr.bf16.mxu0 0
        %774 = vmatpush2.bf16.msra.mxu0 0
        %775 = vmatprep.subr.bf16.mxu0 0
        %776 = vmatpush2.bf16.msra.mxu0 0
        %777 = vmatprep.subr.bf16.mxu0 0
        %778 = vmatpush2.bf16.msra.mxu0 0
        %779 = vmatprep.subr.bf16.mxu0 0
        %780 = vmatpush2.bf16.msra.mxu0 0
        %781 = vmatprep.subr.bf16.mxu0 0
        %782 = vmatpush2.bf16.msra.mxu0 0
        %783 = vmatprep.subr.bf16.mxu0 0
        %784 = vmatpush2.bf16.msra.mxu0 0
        %785 = vmatprep.subr.bf16.mxu0 0
        %786 = vmatpush2.bf16.msra.mxu0 0
        %787 = vmatprep.subr.bf16.mxu0 0
        %788 = vmatpush2.bf16.msra.mxu0 0
        %789 = vmatprep.mubr.bf16.mxu0 0
        %790 = vmatmul.mubr.bf16.gmra.mxu0 %v755
        %v791 = vpop.f32.mrf.mxu0
        %v792 = vadd.f32 %v740, %v791
        %v793 = vpop.f32.mrf.mxu0
        %v794 = vpop.f32.mrf.mxu0
        %v795 = vpop.f32.mrf.mxu0
        %796 = vdwg.mxu0
        %v797 = vmax.f32 %v792, 0.0
        %v798 = vpack.c.bf16 %v797, %v797
        %v800 = vlaneseq
        %v801 = vshrl.u32 %v800, 7
        %v802 = vsub.s32 0, %v801
        %v803 = vrot.slane %v576, %v802
        %v821 = vunpack.c.l.b16 %v581
        %v822 = vunpack.c.l.b16 %v582
        %v823 = vunpack.c.l.b16 %v583
        %v824 = vunpack.c.l.b16 %v584
        %v825 = vunpack.c.l.b16 %v585
        %v826 = vunpack.c.l.b16 %v586
        %v827 = vunpack.c.l.b16 %v587
        %v828 = vunpack.c.l.b16 %v588
        %v829 = vunpack.c.l.b16 %v589
        %v830 = vunpack.c.l.b16 %v590
        %v831 = vunpack.c.l.b16 %v591
        %v832 = vunpack.c.l.b16 %v592
        %v833 = vunpack.c.l.b16 %v593
        %v834 = vunpack.c.l.b16 %v594
        %v835 = vunpack.c.l.b16 %v595
        %v836 = vunpack.c.l.b16 %v596
        %v837 = vpack.c.b16 %v822, %v821
        %v838 = vpack.c.b16 %v824, %v823
        %v839 = vpack.c.b16 %v826, %v825
        %v840 = vpack.c.b16 %v828, %v827
        %v841 = vpack.c.b16 %v830, %v829
        %v842 = vpack.c.b16 %v832, %v831
        %v843 = vpack.c.b16 %v834, %v833
        %v844 = vpack.c.b16 %v836, %v835
        %853 = vmatprep.subr.bf16.mxu0 0
        %854 = vmatpush1.bf16.msra.mxu0 %v844
        %855 = vmatprep.subr.bf16.mxu0 0
        %856 = vmatpush1.bf16.msra.mxu0 %v843
        %857 = vmatprep.subr.bf16.mxu0 0
        %858 = vmatpush1.bf16.msra.mxu0 %v842
        %859 = vmatprep.subr.bf16.mxu0 0
        %860 = vmatpush1.bf16.msra.mxu0 %v841
        %861 = vmatprep.subr.bf16.mxu0 0
        %862 = vmatpush1.bf16.msra.mxu0 %v840
        %863 = vmatprep.subr.bf16.mxu0 0
        %864 = vmatpush1.bf16.msra.mxu0 %v839
        %865 = vmatprep.subr.bf16.mxu0 0
        %866 = vmatpush1.bf16.msra.mxu0 %v838
        %867 = vmatprep.subr.bf16.mxu0 0
        %868 = vmatpush1.bf16.msra.mxu0 %v837
        %869 = vmatprep.subr.bf16.mxu0 0
        %870 = vmatpush2.bf16.msra.mxu0 0
        %871 = vmatprep.subr.bf16.mxu0 0
        %872 = vmatpush2.bf16.msra.mxu0 0
        %873 = vmatprep.subr.bf16.mxu0 0
        %874 = vmatpush2.bf16.msra.mxu0 0
        %875 = vmatprep.subr.bf16.mxu0 0
        %876 = vmatpush2.bf16.msra.mxu0 0
        %877 = vmatprep.subr.bf16.mxu0 0
        %878 = vmatpush2.bf16.msra.mxu0 0
        %879 = vmatprep.subr.bf16.mxu0 0
        %880 = vmatpush2.bf16.msra.mxu0 0
        %881 = vmatprep.subr.bf16.mxu0 0
        %882 = vmatpush2.bf16.msra.mxu0 0
        %883 = vmatprep.subr.bf16.mxu0 0
        %884 = vmatpush2.bf16.msra.mxu0 0
        %885 = vmatprep.mubr.bf16.mxu0 0
        %886 = vmatmul.mubr.bf16.gmra.mxu0 %v798
        %v887 = vpop.f32.mrf.mxu0
        %v888 = vadd.f32 %v803, %v887
        %v889 = vpop.f32.mrf.mxu0
        %v890 = vpop.f32.mrf.mxu0
        %v891 = vpop.f32.mrf.mxu0
        %892 = vdwg.mxu0
        %v893 = vadd.f32 %v734, %v888
        %v894 = vsel %vm706, %v893, 0.0
        %895 = vadd.xlane.f32.xlu0 %v894
        %v896 = vpop.xlane.xlu0 %895
        %v897 = vmul.f32 %v896, %v710
        %v898 = vsub.f32 %v893, %v897
        %v899 = vmul.f32 %v898, %v898
        %v900 = vsel %vm706, %v899, 0.0
        %901 = vadd.xlane.f32.xlu0 %v900
        %v902 = vpop.xlane.xlu0 %901
        %v903 = vmul.f32 %v902, %v710
        %v904 = vadd.f32 %v903, 1e-05
        %v905 = vrsqrt.pop %v904
        %v906 = vmul.f32 %v898, %v905
        %v908 = vlaneseq
        %v909 = vshrl.u32 %v908, 7
        %v910 = vsub.s32 0, %v909
        %v911 = vrot.slane %v573, %v910
        %v913 = vmul.f32 %v906, %v911
        %v915 = vlaneseq
        %v916 = vshrl.u32 %v915, 7
        %v917 = vsub.s32 0, %v916
        %v918 = vrot.slane %v574, %v917
        %v920 = vadd.f32 %v913, %v918
        %921 = vst.msk [vmem:[%s431] sm:$0xff] %vm706, %v920
        %s922 = sand.u32 %s310, 1
        %s923 = scalar_lea.sflag [#allocation4], %s922
        %s924 = sand.u32 %s310, 1
        %s925 = smul.addr %s924, 8
        %s926 = scalar_lea.vmem [#allocation3], %s925
        // Predicated region
        $region73: #{tpu_custom_call.1} parent=67 // pred_check
          %p927 = pneg %p320
        $region74: #{tpu_custom_call.1} parent=67 // pred_check_branch
          %929 = sbr.rel (%p927) target = $region76
        $region75: #{tpu_custom_call.1} parent=67 // pred_region
          %s931 = ssub.s32 128, 128
          %932 = vsyncadd %s923, %s931
          %s933 = sadd.s32 %s31, %s30
          %s934 = smul.addr %s933, 128
          %s935 = scalar_lea.hbm %s12, %s934
          %s937 = sshll.u32 %s926, 4
          %s938 = int_to_ptr.vmem [resolvable:$true] %s937
          %940 = dma.vmem_to_hbm [thread:$0]  %s938, 128, %s935, %s923
        $region76: #{tpu_custom_call.1} parent=67 // pred_fallthru
          _
      $region68: #{tpu_custom_call.1} parent=5 // pred_fallthru
        _
      %p941 = scmp.le.s32.totalorder 2, %s21
      // Predicated region
      $region77: #{tpu_custom_call.1} parent=5 // pred_check
        %p942 = pneg %p941
      $region78: #{tpu_custom_call.1} parent=5 // pred_check_branch
        %944 = sbr.rel (%p942) target = $region80
      $region79: #{tpu_custom_call.1} parent=5 // pred_region
        %s945 = ssub.s32 %s21, 2
        // Predicated region
        $region81: #{tpu_custom_call.1} parent=79 // pred_check
          %p946 = pneg %p326
        $region82: #{tpu_custom_call.1} parent=79 // pred_check_branch
          %948 = sbr.rel (%p946) target = $region84
        $region83: #{tpu_custom_call.1} parent=79 // pred_region
          %s949 = sand.u32 %s311, 1
          %s950 = scalar_lea.sflag [#allocation4], %s949
          %s951 = sand.u32 %s311, 1
          %s952 = smul.addr %s951, 8
          %s953 = scalar_lea.vmem [#allocation3], %s952
          %954 = dma.done %s950, 128
        $region84: #{tpu_custom_call.1} parent=79 // pred_fallthru
          _
      $region80: #{tpu_custom_call.1} parent=5 // pred_fallthru
        _
    $region6: #{tpu_custom_call.1} parent=1 // loop_footer
      %s25 = sadd.s32 1, %s21
    $region7: #{tpu_custom_call.1} parent=1 // loop_footer_branch
      %20 = sbr.rel target = $region3
    $region8: #{tpu_custom_call.1} parent=1 // loop_exit
      _
    %955 = vsyncpa [#allocation4], 1
    %s956 = scalar_lea.sflag [#allocation4], 1
    %957 = vsyncpa %s956, 1

</llo_original>
